<compile_context>
chip_gen: v5e
topology: v5e:2x2
jax: 0.10.0
libtpu: 0.0.40
codegen_flags: <defaults>
</compile_context>

<pallas_src>
import functools

import jax
import jax.numpy as jnp
import numpy as np
from jax.experimental import pallas as pl
from jax.experimental.pallas import tpu as pltpu


def _fourier_mse_kernel(pred_ref, gt_ref, cos_ref, w_ref, out_ref, *,
                        tm, m_rows, mask_rows):
    # Difference in f32 on the VPU (portable; avoids bf16 cancellation when
    # pred ~= gt), cast to bf16 only for the MXU matmul, accumulate in f32.
    d = pred_ref[...] - gt_ref[...]                               # (tm, N) f32
    if mask_rows:
        row = jax.lax.broadcasted_iota(jnp.int32, (tm, 1), 0)
        row = row + pl.program_id(0) * tm
        d = jnp.where(row < m_rows, d, 0.0)                       # zero OOB rows
    r = jnp.dot(d.astype(jnp.bfloat16), cos_ref[...],
                preferred_element_type=jnp.float32)               # (tm, tn) f32
    # Weighted per-column partial sums (Re-DFT symmetry weights), lane-dense.
    s = jnp.sum(r * r, axis=0, keepdims=True) * w_ref[...]        # (1, tn)
    out_ref[...] = s[None]                                        # (1, 1, tn)


@functools.lru_cache(maxsize=8)
def _half_cos_and_weights(n: int, ncols_pad: int):
    """Half-spectrum cosine DFT matrix C[j,k] = cos(2*pi*j*k/n) for k <= n//2,
    plus the column weights that recover the full-spectrum sum of Re^2.

    Built on host with numpy (int64 phase, f64 cos): exact for any practical n
    and safe to lru_cache even when the wrapper is traced under jit."""
    j = np.arange(n, dtype=np.int64)[:, None]
    k = np.arange(ncols_pad, dtype=np.int64)[None, :]
    ang = ((j * k) % n).astype(np.float64) * (2.0 * np.pi / n)
    c = np.cos(ang)
    ncols = n // 2 + 1
    c[:, ncols:] = 0.0                       # padded columns contribute zero
    w = np.zeros((1, ncols_pad), dtype=np.float32)
    w[0, 0] = 1.0
    if n % 2 == 0:
        w[0, 1:n // 2] = 2.0
        if n >= 2:
            w[0, n // 2] = 1.0               # Nyquist bin is self-paired
    else:
        w[0, 1:n // 2 + 1] = 2.0
    return c.astype(np.float32), w


def _round_up(x, m):
    return ((x + m - 1) // m) * m


def fourier_mse_loss(pred, gt):
    """mean((Re(FFT(pred, -1)) - Re(FFT(gt, -1)))**2) via a Pallas TPU kernel."""
    assert pred.shape == gt.shape
    N = int(pred.shape[-1])
    M = int(np.prod(pred.shape[:-1]))

    p = pred.reshape(M, N).astype(jnp.float32)
    g = gt.reshape(M, N).astype(jnp.float32)

    # Pad rows to a multiple of 8 only when needed (<= 7 extra zero rows).
    M8 = _round_up(M, 8)
    if M8 != M:
        p = jnp.pad(p, ((0, M8 - M), (0, 0)))
        g = jnp.pad(g, ((0, M8 - M), (0, 0)))

    # Row tile: large when N is small (HBM-bound regime), clamped so the
    # double-buffered f32 pred/gt tiles stay within ~32 MiB of VMEM.
    tm_target = 1024 if N <= 512 else 256
    tm_vmem_cap = max(8, ((32 << 20) // (16 * N)) // 8 * 8)
    tm = min(tm_target, tm_vmem_cap, M8)
    row_tiles = pl.cdiv(M8, tm)
    mask_rows = (M8 % tm) != 0              # last row tile reads out of bounds

    # Half-spectrum columns (Re-DFT symmetry), padded to a lane multiple and,
    # if the cosine matrix would not fit VMEM, tiled over a second grid axis.
    ncols_raw = N // 2 + 1
    matrix_budget = 12 << 20                # resident single-buffered target
    full_bytes = N * _round_up(ncols_raw, 128) * 2
    if full_bytes <= matrix_budget:
        col_tiles = 1
        tn = _round_up(ncols_raw, 128)
    else:
        col_tiles = -(-full_bytes // matrix_budget)            # ceil div
        tn = _round_up(-(-ncols_raw // col_tiles), 128)
    ncols_pad = tn * col_tiles

    cos_np, w_np = _half_cos_and_weights(N, ncols_pad)
    cos_mat = jnp.asarray(cos_np, dtype=jnp.bfloat16)          # (N, ncols_pad)
    weights = jnp.asarray(w_np)                                # (1, ncols_pad)

    if col_tiles == 1:
        # Constant index_map: single-buffer the resident cosine matrix.
        cos_spec = pl.BlockSpec((N, tn), lambda i, j: (0, j),
                                pipeline_mode=pl.Buffered(1))
    else:
        cos_spec = pl.BlockSpec((N, tn), lambda i, j: (0, j))

    # VMEM working set: cos tile(s) + double-buffered f32 pred/gt tiles.
    cos_bufs = 1 if col_tiles == 1 else 2
    vmem_need = cos_bufs * N * tn * 2 + 2 * 2 * tm * N * 4 + 4 * tn * 4
    try:
        cap = int(pltpu.get_tpu_info().vmem_capacity_bytes * 0.85)
    except Exception:
        cap = 64 << 20                      # safe on every generation
    vmem_limit = min(cap, max(16 << 20, 2 * vmem_need))
    vmem_limit = int(max(vmem_limit, vmem_need + (2 << 20)))

    kernel = functools.partial(_fourier_mse_kernel, tm=tm, m_rows=M,
                               mask_rows=mask_rows)

    partials = pl.pallas_call(
        kernel,
        out_shape=jax.ShapeDtypeStruct((row_tiles, 1, ncols_pad), jnp.float32),
        grid_spec=pltpu.PrefetchScalarGridSpec(
            num_scalar_prefetch=0,
            grid=(row_tiles, col_tiles),    # column axis innermost: pred/gt
            in_specs=[                      # blocks are not re-fetched across j
                pl.BlockSpec((tm, N), lambda i, j: (i, 0)),     # pred rows
                pl.BlockSpec((tm, N), lambda i, j: (i, 0)),     # gt rows
                cos_spec,                                       # cos DFT tile
                pl.BlockSpec((1, tn), lambda i, j: (0, j)),     # column weights
            ],
            out_specs=pl.BlockSpec((1, 1, tn), lambda i, j: (i, 0, j)),
        ),
        compiler_params=pltpu.CompilerParams(
            dimension_semantics=("parallel", "parallel"),
            vmem_limit_bytes=vmem_limit),
    )(p, g, cos_mat, weights)

    # sum_k Re(FFT(d))_k^2 over all rows, divided by the element count (mean).
    return jnp.sum(partials) / jnp.float32(M * N)


if __name__ == "__main__":
    key = jax.random.PRNGKey(0)
    k1, k2, k3, k4 = jax.random.split(key, 4)

    def _ref_loss(a, b):
        return jnp.mean((jnp.real(jnp.fft.fft(a, axis=-1))
                         - jnp.real(jnp.fft.fft(b, axis=-1))) ** 2)

    # Case 1: batch=2, channels=4, fft dim=128.
    shape = (2, 4, 128)
    pred = jax.random.normal(k1, shape, dtype=jnp.float32)
    gt = jax.random.normal(k2, shape, dtype=jnp.float32)
    loss = jax.block_until_ready(fourier_mse_loss(pred, gt))
    np.testing.assert_allclose(np.asarray(loss), np.asarray(_ref_loss(pred, gt)),
                               rtol=2e-2, atol=1e-3)

    # Case 2: row count not a multiple of 8 (exercises the small row pad).
    shape2 = (3, 5, 128)
    pred2 = jax.random.normal(k3, shape2, dtype=jnp.float32)
    gt2 = jax.random.normal(k4, shape2, dtype=jnp.float32)
    loss2 = jax.block_until_ready(fourier_mse_loss(pred2, gt2))
    np.testing.assert_allclose(np.asarray(loss2),
                               np.asarray(_ref_loss(pred2, gt2)),
                               rtol=2e-2, atol=1e-3)

    print("KERNEL_OK")
</pallas_src>

<mosaic_0001>
module attributes {stable_mosaic.version = 11 : i64} {
  func.func @_fourier_mse_kernel(%arg0: i32, %arg1: i32, %arg2: memref<8x128xf32, #tpu.memory_space<vmem>>, %arg3: memref<8x128xf32, #tpu.memory_space<vmem>>, %arg4: memref<128x128xbf16, #tpu.memory_space<vmem>>, %arg5: memref<1x128xf32, #tpu.memory_space<vmem>>, %arg6: memref<1x1x128xf32, #tpu.memory_space<vmem>>) attributes {dimension_semantics = [#tpu.dimension_semantics<parallel>, #tpu.dimension_semantics<parallel>], iteration_bounds = array<i64: 1, 1>, scalar_prefetch = 0 : i64, scratch_operands = 0 : i64, tpu.core_type = #tpu.core_type<tc>, window_params = [{transform_indices = @transform_0, window_bounds = array<i64: 8, 128>}, {transform_indices = @transform_1, window_bounds = array<i64: 8, 128>}, {pipeline_mode = #tpu.pipeline_mode<synchronous>, transform_indices = @transform_2, window_bounds = array<i64: 128, 128>}, {transform_indices = @transform_3, window_bounds = array<i64: 1, 128>}, {transform_indices = @transform_4, window_bounds = array<i64: 1, 1, 128>}]} {
    %c0 = arith.constant 0 : index
    %c0_0 = arith.constant 0 : index
    %0 = vector.load %arg2[%c0, %c0_0] : memref<8x128xf32, #tpu.memory_space<vmem>>, vector<8x128xf32>
    %c0_1 = arith.constant 0 : index
    %c0_2 = arith.constant 0 : index
    %1 = vector.load %arg3[%c0_1, %c0_2] : memref<8x128xf32, #tpu.memory_space<vmem>>, vector<8x128xf32>
    %2 = arith.subf %0, %1 : vector<8x128xf32>
    %3 = arith.truncf %2 : vector<8x128xf32> to vector<8x128xbf16>
    %c0_3 = arith.constant 0 : index
    %c0_4 = arith.constant 0 : index
    %4 = vector.load %arg4[%c0_3, %c0_4] : memref<128x128xbf16, #tpu.memory_space<vmem>>, vector<128x128xbf16>
    %cst = arith.constant dense<0.000000e+00> : vector<8x128xf32>
    %5 = tpu.matmul %3, %4, %cst {dimension_numbers = #tpu.dot_dimension_numbers<[1], [0], [0], [1], [0, 0, 1, 1], [], []>} : vector<8x128xbf16>, vector<128x128xbf16>, vector<8x128xf32> -> vector<8x128xf32>
    %6 = arith.mulf %5, %5 : vector<8x128xf32>
    %cst_5 = arith.constant dense<0.000000e+00> : vector<128xf32>
    %7 = vector.multi_reduction <add>, %6, %cst_5 [0] : vector<8x128xf32> to vector<128xf32>
    %8 = vector.shape_cast %7 : vector<128xf32> to vector<1x128xf32>
    %c0_6 = arith.constant 0 : index
    %c0_7 = arith.constant 0 : index
    %9 = vector.load %arg5[%c0_6, %c0_7] : memref<1x128xf32, #tpu.memory_space<vmem>>, vector<1x128xf32>
    %10 = arith.mulf %8, %9 : vector<1x128xf32>
    %11 = vector.shape_cast %10 : vector<1x128xf32> to vector<1x1x128xf32>
    %c0_8 = arith.constant 0 : index
    %c0_9 = arith.constant 0 : index
    %c0_10 = arith.constant 0 : index
    %12 = vector.load %arg6[%c0_8, %c0_9, %c0_10] : memref<1x1x128xf32, #tpu.memory_space<vmem>>, vector<1x1x128xf32>
    tpu.vector_store %arg6[%c0_8, %c0_9, %c0_10], %11 {strides = array<i32>} : memref<1x1x128xf32, #tpu.memory_space<vmem>>, vector<1x1x128xf32>,
    return
  }
  func.func @transform_0(%arg0: i32, %arg1: i32) -> (i32, i32) {
    %c0_i32 = arith.constant 0 : i32
    %c0_i32_0 = arith.constant 0 : i32
    return %arg0, %c0_i32 : i32, i32
  }
  func.func @transform_1(%arg0: i32, %arg1: i32) -> (i32, i32) {
    %c0_i32 = arith.constant 0 : i32
    %c0_i32_0 = arith.constant 0 : i32
    return %arg0, %c0_i32 : i32, i32
  }
  func.func @transform_2(%arg0: i32, %arg1: i32) -> (i32, i32) {
    %c0_i32 = arith.constant 0 : i32
    %c0_i32_0 = arith.constant 0 : i32
    return %c0_i32, %arg1 : i32, i32
  }
  func.func @transform_3(%arg0: i32, %arg1: i32) -> (i32, i32) {
    %c0_i32 = arith.constant 0 : i32
    %c0_i32_0 = arith.constant 0 : i32
    return %c0_i32, %arg1 : i32, i32
  }
  func.func @transform_4(%arg0: i32, %arg1: i32) -> (i32, i32, i32) {
    %c0_i32 = arith.constant 0 : i32
    %c0_i32_0 = arith.constant 0 : i32
    return %arg0, %c0_i32, %arg1 : i32, i32, i32
  }
}

</mosaic_0001>

<llo_original>
// kernel: tpu_custom_call.1
$region0: #{tpu_custom_call.1}
  #allocation0 [shape = 'u32[]', space=smem, size = 0x4, offset = 0x4, fixed_abs, tag = 'smem constant byte address 0x4 - core index']
  #allocation1 [shape = 'u32[72,128]{1,0:T(1,128)}', space=vmem, size = 0x9000, scoped, tag = 'internal scratch']
  %s0 = inlined_call_operand.hbm [shape: f32[8,128], index: 0, kind: input, shape index: {}]
  %s1 = inlined_call_operand.hbm [shape: f32[8,128], index: 1, kind: input, shape index: {}]
  %s2 = inlined_call_operand.hbm [shape: bf16[128,128], index: 2, kind: input, shape index: {}]
  %s3 = inlined_call_operand.vmem [shape: f32[1,128], index: 3, kind: input, shape index: {}]
  %s4 = inlined_call_operand.hbm [shape: f32[1,1,128], index: 4, kind: output, shape index: {}]
  %s5 = sld [smem:[#allocation0]]
  $region38: #{tpu_custom_call.1} parent=0
    _
  %s7 = ssub.s32 1, %s5
  %s8 = scalar_select 0, %s7, %s5
  $region1: #{tpu_custom_call.1} parent=0
    #allocation2 [shape = 'u8[4096]{0}', space=vmem, size = 0x1000, scoped, tag = 'input window, operand 0, single buffered']
    #allocation3 [shape = 's32[1]{0}', space=sflag, size = 0x4, scoped, tag = 'scoped memory for tpu_custom_call.1']
    #allocation4 [shape = 's32[1]{0}', space=sflag, size = 0x4, scoped, tag = 'scoped memory for tpu_custom_call.1']
    #allocation5 [shape = 'u8[4096]{0}', space=vmem, size = 0x1000, scoped, tag = 'input window, operand 1, single buffered']
    #allocation6 [shape = 's32[1]{0}', space=sflag, size = 0x4, scoped, tag = 'scoped memory for tpu_custom_call.1']
    #allocation7 [shape = 'u8[32768]{0}', space=vmem, size = 0x8000, scoped, tag = 'input window, operand 2, single buffered']
    #allocation8 [shape = 'u8[512]{0}', space=vmem, size = 0x400, scoped, tag = 'output window, operand 0, single buffered']
    %9 = vsyncpa [#allocation3], 0
    %10 = vsyncpa [#allocation6], 0
    %11 = vsyncpa [#allocation4], 0
    // Predicated region
    $region2: #{tpu_custom_call.1} parent=1 // pred_check
      _
    $region3: #{tpu_custom_call.1} parent=1 // pred_check_branch
      %13 = sbr.rel (0) target = $region5
    $region4: #{tpu_custom_call.1} parent=1 // pred_region
      %15 = vsyncadd [#allocation3], 0
      %s17 = sshll.u32 %s0, 4
      %s18 = int_to_ptr.hbm [resolvable:$true] %s17
      %s19 = sshll.u32 [#allocation2], 4
      %s20 = int_to_ptr.vmem [resolvable:$true] %s19
      %22 = dma.hbm_to_vmem [thread:$0]  %s18, 128, %s20, [#allocation3]
    $region5: #{tpu_custom_call.1} parent=1 // pred_fallthru
      _
    // Predicated region
    $region6: #{tpu_custom_call.1} parent=1 // pred_check
      _
    $region7: #{tpu_custom_call.1} parent=1 // pred_check_branch
      %24 = sbr.rel (0) target = $region9
    $region8: #{tpu_custom_call.1} parent=1 // pred_region
      %26 = vsyncadd [#allocation6], 0
      %s28 = sshll.u32 %s1, 4
      %s29 = int_to_ptr.hbm [resolvable:$true] %s28
      %s30 = sshll.u32 [#allocation5], 4
      %s31 = int_to_ptr.vmem [resolvable:$true] %s30
      %33 = dma.hbm_to_vmem [thread:$0]  %s29, 128, %s31, [#allocation6]
    $region9: #{tpu_custom_call.1} parent=1 // pred_fallthru
      _
    // Predicated region
    $region10: #{tpu_custom_call.1} parent=1 // pred_check
      _
    $region11: #{tpu_custom_call.1} parent=1 // pred_check_branch
      %35 = sbr.rel (0) target = $region13
    $region12: #{tpu_custom_call.1} parent=1 // pred_region
      %37 = vsyncadd [#allocation6], 0
      %s38 = sshll.u32 %s2, 4
      %s39 = int_to_ptr.hbm [resolvable:$true] %s38
      %s40 = sshll.u32 [#allocation7], 4
      %s41 = int_to_ptr.vmem [resolvable:$true] %s40
      %46 = dma.hbm_to_vmem [thread:$0]  %s39, 1024, %s41, [#allocation6], 64, 64, 4
    $region13: #{tpu_custom_call.1} parent=1 // pred_fallthru
      _
    // Predicated region
    $region14: #{tpu_custom_call.1} parent=1 // pred_check
      _
    $region15: #{tpu_custom_call.1} parent=1 // pred_check_branch
      %48 = sbr.rel (0) target = $region17
    $region16: #{tpu_custom_call.1} parent=1 // pred_region
      _
    $region17: #{tpu_custom_call.1} parent=1 // pred_fallthru
      _
    // Predicated region
    $region18: #{tpu_custom_call.1} parent=1 // pred_check
      _
    $region19: #{tpu_custom_call.1} parent=1 // pred_check_branch
      %50 = sbr.rel (0) target = $region21
    $region20: #{tpu_custom_call.1} parent=1 // pred_region
      %52 = dma.done [#allocation3], 128
    $region21: #{tpu_custom_call.1} parent=1 // pred_fallthru
      _
    // Predicated region
    $region22: #{tpu_custom_call.1} parent=1 // pred_check
      _
    $region23: #{tpu_custom_call.1} parent=1 // pred_check_branch
      %54 = sbr.rel (0) target = $region25
    $region24: #{tpu_custom_call.1} parent=1 // pred_region
      %56 = dma.done [#allocation6], 128
    $region25: #{tpu_custom_call.1} parent=1 // pred_fallthru
      _
    // Predicated region
    $region26: #{tpu_custom_call.1} parent=1 // pred_check
      _
    $region27: #{tpu_custom_call.1} parent=1 // pred_check_branch
      %58 = sbr.rel (0) target = $region29
    $region28: #{tpu_custom_call.1} parent=1 // pred_region
      %60 = dma.done [#allocation6], 1024
    $region29: #{tpu_custom_call.1} parent=1 // pred_fallthru
      _
    %v61 = vld [vmem:[#allocation2] sm:$0xff]
    %v62 = vld [vmem:[#allocation5] sm:$0xff]
    %v63 = vsub.f32 %v61, %v62
    %v64 = vpack.c.bf16 %v63, %v63
    %v65 = vld [vmem:[#allocation7] sm:$0xf]
    %v66 = vld [vmem:[#allocation7 + $0x4] sm:$0xf]
    %v67 = vld [vmem:[#allocation7 + $0x8] sm:$0xf]
    %v68 = vld [vmem:[#allocation7 + $0xc] sm:$0xf]
    %v69 = vld [vmem:[#allocation7 + $0x10] sm:$0xf]
    %v70 = vld [vmem:[#allocation7 + $0x14] sm:$0xf]
    %v71 = vld [vmem:[#allocation7 + $0x18] sm:$0xf]
    %v72 = vld [vmem:[#allocation7 + $0x1c] sm:$0xf]
    %v73 = vld [vmem:[#allocation7 + $0x20] sm:$0xf]
    %v74 = vld [vmem:[#allocation7 + $0x24] sm:$0xf]
    %v75 = vld [vmem:[#allocation7 + $0x28] sm:$0xf]
    %v76 = vld [vmem:[#allocation7 + $0x2c] sm:$0xf]
    %v77 = vld [vmem:[#allocation7 + $0x30] sm:$0xf]
    %v78 = vld [vmem:[#allocation7 + $0x34] sm:$0xf]
    %v79 = vld [vmem:[#allocation7 + $0x38] sm:$0xf]
    %v80 = vld [vmem:[#allocation7 + $0x3c] sm:$0xf]
    %v97 = vunpack.c.l.b16 %v65
    %v98 = vunpack.c.l.b16 %v66
    %v99 = vunpack.c.l.b16 %v67
    %v100 = vunpack.c.l.b16 %v68
    %v101 = vunpack.c.l.b16 %v69
    %v102 = vunpack.c.l.b16 %v70
    %v103 = vunpack.c.l.b16 %v71
    %v104 = vunpack.c.l.b16 %v72
    %v105 = vunpack.c.l.b16 %v73
    %v106 = vunpack.c.l.b16 %v74
    %v107 = vunpack.c.l.b16 %v75
    %v108 = vunpack.c.l.b16 %v76
    %v109 = vunpack.c.l.b16 %v77
    %v110 = vunpack.c.l.b16 %v78
    %v111 = vunpack.c.l.b16 %v79
    %v112 = vunpack.c.l.b16 %v80
    %v113 = vpack.c.b16 %v98, %v97
    %v114 = vpack.c.b16 %v100, %v99
    %v115 = vpack.c.b16 %v102, %v101
    %v116 = vpack.c.b16 %v104, %v103
    %v117 = vpack.c.b16 %v106, %v105
    %v118 = vpack.c.b16 %v108, %v107
    %v119 = vpack.c.b16 %v110, %v109
    %v120 = vpack.c.b16 %v112, %v111
    %129 = vmatpush.bf16.msra.mxu0 %v120
    %130 = vmatpush.bf16.msra.mxu0 %v119
    %131 = vmatpush.bf16.msra.mxu0 %v118
    %132 = vmatpush.bf16.msra.mxu0 %v117
    %133 = vmatpush.bf16.msra.mxu0 %v116
    %134 = vmatpush.bf16.msra.mxu0 %v115
    %135 = vmatpush.bf16.msra.mxu0 %v114
    %136 = vmatpush.bf16.msra.mxu0 %v113
    %137 = vmatmul.bf16.gmra.mxu0 %v64
    %v138 = vpop.f32.mrf.mxu0
    %v139 = vadd.f32 0.0, %v138
    %v140 = vpop.f32.mrf.mxu0
    %141 = vdwg.mxu0
    %v142 = vmul.f32 %v139, %v139
    %v143 = vrot.slane %v142, 4
    %v144 = vadd.f32 %v142, %v143
    %v145 = vrot.slane %v144, 2
    %v146 = vadd.f32 %v144, %v145
    %v147 = vrot.slane %v146, 1
    %v148 = vadd.f32 %v146, %v147
    %v149 = vld [vmem:[%s3] sm:$0x1]
    %v150 = vmul.f32 %v148, %v149
    %151 = vst [vmem:[#allocation8] sm:$0x1] %v150
    // Predicated region
    $region30: #{tpu_custom_call.1} parent=1 // pred_check
      _
    $region31: #{tpu_custom_call.1} parent=1 // pred_check_branch
      %153 = sbr.rel (0) target = $region33
    $region32: #{tpu_custom_call.1} parent=1 // pred_region
      %155 = vsyncadd [#allocation4], 0
      %s157 = sshll.u32 [#allocation8], 4
      %s158 = int_to_ptr.vmem [resolvable:$true] %s157
      %s159 = sshll.u32 %s4, 4
      %s160 = int_to_ptr.hbm [resolvable:$true] %s159
      %162 = dma.vmem_to_hbm [thread:$0]  %s158, 16, %s160, [#allocation4]
    $region33: #{tpu_custom_call.1} parent=1 // pred_fallthru
      _
    // Predicated region
    $region34: #{tpu_custom_call.1} parent=1 // pred_check
      _
    $region35: #{tpu_custom_call.1} parent=1 // pred_check_branch
      %164 = sbr.rel (0) target = $region37
    $region36: #{tpu_custom_call.1} parent=1 // pred_region
      %166 = dma.done [#allocation4], 16
    $region37: #{tpu_custom_call.1} parent=1 // pred_fallthru
      _
    %167 = vsyncpa [#allocation3], 1
    %168 = vsyncpa [#allocation6], 1
    %169 = vsyncpa [#allocation4], 1

</llo_original>
